<compile_context>
chip_gen: v7x
topology: tpu7x:2x2x1
jax: 0.10.0
libtpu: 0.0.40
codegen_flags: <defaults>
</compile_context>

<pallas_src>
import functools

import jax
import jax.numpy as jnp
from jax.experimental import pallas as pl
from jax.experimental.pallas import tpu as pltpu


D_IN, D_HID, D_OUT = 10, 20, 5


def _round_up(n, m):
    return ((n + m - 1) // m) * m


def mlp_kernel(x_ref, w1_ref, b1_ref, w2_ref, b2_ref, o_ref, *, compute_dtype):
    # x: (TB, 10)  w1: (10, 20)  b1: (1, 20)  w2: (20, 5)  b2: (1, 5)  o: (TB, 5)
    # In-kernel cast of x hides under the input DMA (kernel is DMA-bound, VALU idle).
    x = x_ref[...].astype(compute_dtype)
    h = jnp.dot(x, w1_ref[...], preferred_element_type=jnp.float32)
    h = jnp.maximum(h + b1_ref[...], 0.0)            # f32 epilogue (v5e-safe)
    out = jnp.dot(h.astype(compute_dtype), w2_ref[...],
                  preferred_element_type=jnp.float32)
    out = out + b2_ref[...]
    o_ref[...] = out.astype(o_ref.dtype)


@functools.partial(jax.jit, static_argnames=("block_b", "compute_dtype"))
def simple_network(x, w1, b1, w2, b2, *, block_b=1024, compute_dtype=jnp.float32):
    """out = relu(x @ w1 + b1) @ w2 + b2.

    x:  (B, 10)    w1: (10, 20)   b1: (20,) or (1, 20)
    w2: (20, 5)    b2: (5,)  or (1, 5)
    """
    B = x.shape[0]
    b1 = b1.reshape(1, -1).astype(jnp.float32)       # biases stay f32 (f32 epilogue)
    b2 = b2.reshape(1, -1).astype(jnp.float32)
    w1 = w1.astype(compute_dtype)                    # tiny, one-time cast
    w2 = w2.astype(compute_dtype)

    # Batch tiling:
    #  * pad batch to a multiple of 8 (sublanes),
    #  * >= 2 tiles whenever possible so v7x's two TensorCores both get work,
    #  * TB a multiple of 8 regardless of user block_b, minimal over-padding
    #    (B_pad - B < 8 + 8 * n_tiles, never the old round_up(B, TB) blow-up).
    B8 = _round_up(B, 8)
    n_tiles = pl.cdiv(B8, max(8, _round_up(block_b, 8)))
    if B8 >= 16:
        n_tiles = max(n_tiles, 2)
    TB = _round_up(pl.cdiv(B8, n_tiles), 8)
    B_pad = TB * n_tiles

    # Only batch rows are padded; feature dim stays narrow (10 lanes of HBM traffic).
    x_p = jnp.pad(x, ((0, B_pad - B), (0, 0)))

    kern = functools.partial(mlp_kernel, compute_dtype=compute_dtype)

    out = pl.pallas_call(
        kern,
        out_shape=jax.ShapeDtypeStruct((B_pad, D_OUT), jnp.float32),
        grid_spec=pltpu.PrefetchScalarGridSpec(
            num_scalar_prefetch=0,
            grid=(n_tiles,),
            in_specs=[
                pl.BlockSpec((TB, D_IN), lambda i: (i, 0)),      # x: tiled over batch
                pl.BlockSpec((D_IN, D_HID), lambda i: (0, 0)),   # w1: resident, full block
                pl.BlockSpec((1, D_HID), lambda i: (0, 0)),      # b1: resident
                pl.BlockSpec((D_HID, D_OUT), lambda i: (0, 0)),  # w2: resident
                pl.BlockSpec((1, D_OUT), lambda i: (0, 0)),      # b2: resident
            ],
            out_specs=pl.BlockSpec((TB, D_OUT), lambda i: (i, 0)),  # narrow (TB, 5) writeback
        ),
        compiler_params=pltpu.CompilerParams(
            dimension_semantics=("parallel",),   # batch axis shards across TCs (v7x)
        ),
    )(x_p, w1, b1, w2, b2)

    # Strip only the batch padding (feature dims are already exact).
    return out[:B]


def init_params(key):
    # Deterministic init mimicking nn.Linear's uniform(-1/sqrt(fan_in), 1/sqrt(fan_in)).
    k1, k2, k3, k4 = jax.random.split(key, 4)
    bound1 = 1.0 / jnp.sqrt(D_IN)
    bound2 = 1.0 / jnp.sqrt(D_HID)
    w1 = jax.random.uniform(k1, (D_IN, D_HID), jnp.float32, -bound1, bound1)
    b1 = jax.random.uniform(k2, (1, D_HID), jnp.float32, -bound1, bound1)
    w2 = jax.random.uniform(k3, (D_HID, D_OUT), jnp.float32, -bound2, bound2)
    b2 = jax.random.uniform(k4, (1, D_OUT), jnp.float32, -bound2, bound2)
    return w1, b1, w2, b2


def _ref(x, w1, b1, w2, b2):
    return jnp.maximum(x @ w1 + b1, 0.0) @ w2 + b2


if __name__ == "__main__":
    key = jax.random.PRNGKey(0)
    kx, kp = jax.random.split(key)
    w1, b1, w2, b2 = init_params(kp)

    # Small-batch check (single tile, f32 path, tight tolerance).
    batch = 8
    x = jax.random.normal(kx, (batch, D_IN), jnp.float32)
    out = jax.block_until_ready(simple_network(x, w1, b1, w2, b2))
    ref = _ref(x, w1, b1, w2, b2)
    assert out.shape == (batch, D_OUT)
    assert jnp.allclose(out, ref, atol=1e-5, rtol=1e-5)

    # Multi-tile check (grid=(2,), ragged batch -> row padding) with bf16 MXU operands
    # and f32 accumulation/epilogue; valid on v5e/v6e/v7x. Looser tolerance for bf16.
    batch2 = 200
    x2 = jax.random.normal(jax.random.PRNGKey(1), (batch2, D_IN), jnp.float32)
    out2 = jax.block_until_ready(
        simple_network(x2, w1, b1, w2, b2, block_b=1024, compute_dtype=jnp.bfloat16))
    ref2 = _ref(x2, w1, b1, w2, b2)
    assert out2.shape == (batch2, D_OUT)
    assert jnp.allclose(out2, ref2, atol=5e-2, rtol=5e-2)

    print("KERNEL_OK")
</pallas_src>

<mosaic_0001>
module attributes {stable_mosaic.version = 11 : i64} {
  func.func @mlp_kernel(%arg0: i32, %arg1: memref<8x10xf32, #tpu.memory_space<vmem>>, %arg2: memref<10x20xf32, #tpu.memory_space<vmem>>, %arg3: memref<1x20xf32, #tpu.memory_space<vmem>>, %arg4: memref<20x5xf32, #tpu.memory_space<vmem>>, %arg5: memref<1x5xf32, #tpu.memory_space<vmem>>, %arg6: memref<8x5xf32, #tpu.memory_space<vmem>>) attributes {dimension_semantics = [#tpu.dimension_semantics<parallel>], iteration_bounds = array<i64: 1>, scalar_prefetch = 0 : i64, scratch_operands = 0 : i64, tpu.core_type = #tpu.core_type<tc>, window_params = [{transform_indices = @transform_0, window_bounds = array<i64: 8, 10>}, {pipeline_mode = #tpu.pipeline_mode<synchronous>, transform_indices = @transform_1, window_bounds = array<i64: 10, 20>}, {pipeline_mode = #tpu.pipeline_mode<synchronous>, transform_indices = @transform_2, window_bounds = array<i64: 1, 20>}, {pipeline_mode = #tpu.pipeline_mode<synchronous>, transform_indices = @transform_3, window_bounds = array<i64: 20, 5>}, {pipeline_mode = #tpu.pipeline_mode<synchronous>, transform_indices = @transform_4, window_bounds = array<i64: 1, 5>}, {transform_indices = @transform_5, window_bounds = array<i64: 8, 5>}]} {
    %c0 = arith.constant 0 : index
    %c0_0 = arith.constant 0 : index
    %0 = vector.load %arg1[%c0, %c0_0] : memref<8x10xf32, #tpu.memory_space<vmem>>, vector<8x10xf32>
    %c0_1 = arith.constant 0 : index
    %c0_2 = arith.constant 0 : index
    %1 = vector.load %arg2[%c0_1, %c0_2] : memref<10x20xf32, #tpu.memory_space<vmem>>, vector<10x20xf32>
    %cst = arith.constant dense<0.000000e+00> : vector<8x20xf32>
    %2 = tpu.matmul %0, %1, %cst {dimension_numbers = #tpu.dot_dimension_numbers<[1], [0], [0], [1], [0, 0, 1, 1], [], []>} : vector<8x10xf32>, vector<10x20xf32>, vector<8x20xf32> -> vector<8x20xf32>
    %c0_3 = arith.constant 0 : index
    %c0_4 = arith.constant 0 : index
    %3 = vector.load %arg3[%c0_3, %c0_4] : memref<1x20xf32, #tpu.memory_space<vmem>>, vector<1x20xf32>
    %4 = vector.broadcast %3 : vector<1x20xf32> to vector<8x20xf32>
    %5 = arith.addf %2, %4 : vector<8x20xf32>
    %cst_5 = arith.constant 0.000000e+00 : f32
    %6 = vector.broadcast %cst_5 : f32 to vector<8x20xf32>
    %7 = arith.maximumf %5, %6 : vector<8x20xf32>
    %c0_6 = arith.constant 0 : index
    %c0_7 = arith.constant 0 : index
    %8 = vector.load %arg4[%c0_6, %c0_7] : memref<20x5xf32, #tpu.memory_space<vmem>>, vector<20x5xf32>
    %cst_8 = arith.constant dense<0.000000e+00> : vector<8x5xf32>
    %9 = tpu.matmul %7, %8, %cst_8 {dimension_numbers = #tpu.dot_dimension_numbers<[1], [0], [0], [1], [0, 0, 1, 1], [], []>} : vector<8x20xf32>, vector<20x5xf32>, vector<8x5xf32> -> vector<8x5xf32>
    %c0_9 = arith.constant 0 : index
    %c0_10 = arith.constant 0 : index
    %10 = vector.load %arg5[%c0_9, %c0_10] : memref<1x5xf32, #tpu.memory_space<vmem>>, vector<1x5xf32>
    %11 = vector.broadcast %10 : vector<1x5xf32> to vector<8x5xf32>
    %12 = arith.addf %9, %11 : vector<8x5xf32>
    %c0_11 = arith.constant 0 : index
    %c0_12 = arith.constant 0 : index
    %13 = vector.load %arg6[%c0_11, %c0_12] : memref<8x5xf32, #tpu.memory_space<vmem>>, vector<8x5xf32>
    tpu.vector_store %arg6[%c0_11, %c0_12], %12 {strides = array<i32>} : memref<8x5xf32, #tpu.memory_space<vmem>>, vector<8x5xf32>,
    return
  }
  func.func @transform_0(%arg0: i32) -> (i32, i32) {
    %c0_i32 = arith.constant 0 : i32
    %c0_i32_0 = arith.constant 0 : i32
    return %arg0, %c0_i32 : i32, i32
  }
  func.func @transform_1(%arg0: i32) -> (i32, i32) {
    %c0_i32 = arith.constant 0 : i32
    %c0_i32_0 = arith.constant 0 : i32
    %c0_i32_1 = arith.constant 0 : i32
    return %c0_i32, %c0_i32_0 : i32, i32
  }
  func.func @transform_2(%arg0: i32) -> (i32, i32) {
    %c0_i32 = arith.constant 0 : i32
    %c0_i32_0 = arith.constant 0 : i32
    %c0_i32_1 = arith.constant 0 : i32
    return %c0_i32, %c0_i32_0 : i32, i32
  }
  func.func @transform_3(%arg0: i32) -> (i32, i32) {
    %c0_i32 = arith.constant 0 : i32
    %c0_i32_0 = arith.constant 0 : i32
    %c0_i32_1 = arith.constant 0 : i32
    return %c0_i32, %c0_i32_0 : i32, i32
  }
  func.func @transform_4(%arg0: i32) -> (i32, i32) {
    %c0_i32 = arith.constant 0 : i32
    %c0_i32_0 = arith.constant 0 : i32
    %c0_i32_1 = arith.constant 0 : i32
    return %c0_i32, %c0_i32_0 : i32, i32
  }
  func.func @transform_5(%arg0: i32) -> (i32, i32) {
    %c0_i32 = arith.constant 0 : i32
    %c0_i32_0 = arith.constant 0 : i32
    return %arg0, %c0_i32 : i32, i32
  }
}

</mosaic_0001>

<llo_original>
// kernel: simple_network.1
$region0: #{simple_network.1}
  #allocation0 [shape = 'u32[]', space=smem, size = 0x4, offset = 0x4, fixed_abs, tag = 'smem constant byte address 0x4 - core index']
  #allocation1 [shape = 'u32[144,128]{1,0:T(1,128)}', space=vmem, size = 0x12000, scoped, tag = 'internal scratch']
  %s0 = inlined_call_operand.vmem [shape: f32[8,10], index: 0, kind: input, shape index: {}]
  %s1 = inlined_call_operand.vmem [shape: f32[10,20], index: 1, kind: input, shape index: {}]
  %s2 = inlined_call_operand.vmem [shape: f32[1,20], index: 2, kind: input, shape index: {}]
  %s3 = inlined_call_operand.vmem [shape: f32[20,5], index: 3, kind: input, shape index: {}]
  %s4 = inlined_call_operand.vmem [shape: f32[1,5], index: 4, kind: input, shape index: {}]
  %s5 = inlined_call_operand.hbm [shape: f32[8,5], index: 5, kind: output, shape index: {}]
  %s6 = sld [smem:[#allocation0]]
  $region30: #{simple_network.1} parent=0
    _
  %s8 = ssub.s32 1, %s6
  %s9 = scalar_select 0, %s8, %s6
  $region1: #{simple_network.1} parent=0
    #allocation2 [shape = 'u8[4096]{0}', space=vmem, size = 0x1000, scoped, tag = 'output window, operand 0, single buffered']
    #allocation3 [shape = 's32[1]{0}', space=sflag, size = 0x4, scoped, tag = 'scoped memory for simple_network.1']
    %10 = vsyncpa [#allocation3], 0
    // Predicated region
    $region2: #{simple_network.1} parent=1 // pred_check
      _
    $region3: #{simple_network.1} parent=1 // pred_check_branch
      %12 = sbr.rel (0) target = $region5
    $region4: #{simple_network.1} parent=1 // pred_region
      _
    $region5: #{simple_network.1} parent=1 // pred_fallthru
      _
    // Predicated region
    $region6: #{simple_network.1} parent=1 // pred_check
      _
    $region7: #{simple_network.1} parent=1 // pred_check_branch
      %14 = sbr.rel (0) target = $region9
    $region8: #{simple_network.1} parent=1 // pred_region
      _
    $region9: #{simple_network.1} parent=1 // pred_fallthru
      _
    // Predicated region
    $region10: #{simple_network.1} parent=1 // pred_check
      _
    $region11: #{simple_network.1} parent=1 // pred_check_branch
      %16 = sbr.rel (0) target = $region13
    $region12: #{simple_network.1} parent=1 // pred_region
      _
    $region13: #{simple_network.1} parent=1 // pred_fallthru
      _
    // Predicated region
    $region14: #{simple_network.1} parent=1 // pred_check
      _
    $region15: #{simple_network.1} parent=1 // pred_check_branch
      %18 = sbr.rel (0) target = $region17
    $region16: #{simple_network.1} parent=1 // pred_region
      _
    $region17: #{simple_network.1} parent=1 // pred_fallthru
      _
    // Predicated region
    $region18: #{simple_network.1} parent=1 // pred_check
      _
    $region19: #{simple_network.1} parent=1 // pred_check_branch
      %20 = sbr.rel (0) target = $region21
    $region20: #{simple_network.1} parent=1 // pred_region
      _
    $region21: #{simple_network.1} parent=1 // pred_fallthru
      _
    %v21 = vld [vmem:[%s0] sm:$0xff]
    %v22 = vld [vmem:[%s1] sm:$0xff]
    %v23 = vld [vmem:[%s1 + $0x8] sm:$0x3]
    %v24 = vld [vmem:[%s2] sm:$0x1]
    %v26 = vlaneseq
    %v27 = vshrl.u32 %v26, 7
    %v28 = vsub.s32 0, %v27
    %v29 = vrot.slane %v24, %v28
    %vm31 = vcmask 80896
    %v33 = vsel %vm31, %v21, 0
    %vm35 = vcmask 1041408
    %v37 = vsel %vm35, %v23, 0
    %39 = vmatprep.subr.mxu0 0.0
    %40 = vmatpush1.msra.mxu0 %v22
    %41 = vmatprep.subr.mxu0 0.0
    %42 = vmatpush1.msra.mxu0 %v37
    %43 = vmatprep.subr.mxu0 0.0
    %44 = vmatpush1.msra.mxu0 0.0
    %45 = vmatprep.subr.mxu0 0.0
    %46 = vmatpush1.msra.mxu0 0.0
    %47 = vmatprep.subr.mxu0 0.0
    %48 = vmatpush1.msra.mxu0 0.0
    %49 = vmatprep.subr.mxu0 0.0
    %50 = vmatpush1.msra.mxu0 0.0
    %51 = vmatprep.subr.mxu0 0.0
    %52 = vmatpush1.msra.mxu0 0.0
    %53 = vmatprep.subr.mxu0 0.0
    %54 = vmatpush1.msra.mxu0 0.0
    %55 = vmatprep.subr.mxu0 0.0
    %56 = vmatpush1.msra.mxu0 0.0
    %57 = vmatprep.subr.mxu0 0.0
    %58 = vmatpush1.msra.mxu0 0.0
    %59 = vmatprep.subr.mxu0 0.0
    %60 = vmatpush1.msra.mxu0 0.0
    %61 = vmatprep.subr.mxu0 0.0
    %62 = vmatpush1.msra.mxu0 0.0
    %63 = vmatprep.subr.mxu0 0.0
    %64 = vmatpush1.msra.mxu0 0.0
    %65 = vmatprep.subr.mxu0 0.0
    %66 = vmatpush1.msra.mxu0 0.0
    %67 = vmatprep.subr.mxu0 0.0
    %68 = vmatpush1.msra.mxu0 0.0
    %69 = vmatprep.subr.mxu0 0.0
    %70 = vmatpush1.msra.mxu0 0.0
    %71 = vmatprep.subr.mxu0 0.0
    %72 = vmatpush1.msra.mxu0 0.0
    %73 = vmatprep.subr.mxu0 0.0
    %74 = vmatpush1.msra.mxu0 0.0
    %75 = vmatprep.subr.mxu0 0.0
    %76 = vmatpush1.msra.mxu0 0.0
    %77 = vmatprep.subr.mxu0 0.0
    %78 = vmatpush1.msra.mxu0 0.0
    %79 = vmatprep.subr.mxu0 0.0
    %80 = vmatpush1.msra.mxu0 0.0
    %81 = vmatprep.subr.mxu0 0.0
    %82 = vmatpush1.msra.mxu0 0.0
    %83 = vmatprep.subr.mxu0 0.0
    %84 = vmatpush1.msra.mxu0 0.0
    %85 = vmatprep.subr.mxu0 0.0
    %86 = vmatpush1.msra.mxu0 0.0
    %87 = vmatprep.subr.mxu0 0.0
    %88 = vmatpush1.msra.mxu0 0.0
    %89 = vmatprep.subr.mxu0 0.0
    %90 = vmatpush1.msra.mxu0 0.0
    %91 = vmatprep.subr.mxu0 0.0
    %92 = vmatpush1.msra.mxu0 0.0
    %93 = vmatprep.subr.mxu0 0.0
    %94 = vmatpush1.msra.mxu0 0.0
    %95 = vmatprep.subr.mxu0 0.0
    %96 = vmatpush1.msra.mxu0 0.0
    %97 = vmatprep.subr.mxu0 0.0
    %98 = vmatpush1.msra.mxu0 0.0
    %99 = vmatprep.subr.mxu0 0.0
    %100 = vmatpush1.msra.mxu0 0.0
    %101 = vmatprep.subr.mxu0 0.0
    %102 = vmatpush1.msra.mxu0 0.0
    %103 = vmatprep.mubr.f32.mxu0 0.0
    %104 = vmatmul.mubr.f32.gmra.mrb[0].mxu0 %v33
    %v105 = vpop.f32.mrb[0].mxu0
    %v106 = vadd.f32 %v29, %v105
    %v107 = vpop.f32.mrb[0].mxu0
    %108 = vdwg.mxu0
    %v109 = vmax.f32 %v106, 0.0
    %v110 = vld [vmem:[%s3] sm:$0xff]
    %v111 = vld [vmem:[%s3 + $0x8] sm:$0xff]
    %v112 = vld [vmem:[%s3 + $0x10] sm:$0xf]
    %v113 = vld [vmem:[%s4] sm:$0x1]
    %v115 = vlaneseq
    %v116 = vshrl.u32 %v115, 7
    %v117 = vsub.s32 0, %v116
    %v118 = vrot.slane %v113, %v117
    %vm120 = vcmask 162816
    %v122 = vsel %vm120, %v109, 0
    %vm124 = vcmask 1043456
    %v126 = vsel %vm124, %v112, 0
    %128 = vmatprep.subr.mxu0 0.0
    %129 = vmatpush1.msra.mxu0 %v110
    %130 = vmatprep.subr.mxu0 0.0
    %131 = vmatpush1.msra.mxu0 %v111
    %132 = vmatprep.subr.mxu0 0.0
    %133 = vmatpush1.msra.mxu0 %v126
    %134 = vmatprep.subr.mxu0 0.0
    %135 = vmatpush1.msra.mxu0 0.0
    %136 = vmatprep.subr.mxu0 0.0
    %137 = vmatpush1.msra.mxu0 0.0
    %138 = vmatprep.subr.mxu0 0.0
    %139 = vmatpush1.msra.mxu0 0.0
    %140 = vmatprep.subr.mxu0 0.0
    %141 = vmatpush1.msra.mxu0 0.0
    %142 = vmatprep.subr.mxu0 0.0
    %143 = vmatpush1.msra.mxu0 0.0
    %144 = vmatprep.subr.mxu0 0.0
    %145 = vmatpush1.msra.mxu0 0.0
    %146 = vmatprep.subr.mxu0 0.0
    %147 = vmatpush1.msra.mxu0 0.0
    %148 = vmatprep.subr.mxu0 0.0
    %149 = vmatpush1.msra.mxu0 0.0
    %150 = vmatprep.subr.mxu0 0.0
    %151 = vmatpush1.msra.mxu0 0.0
    %152 = vmatprep.subr.mxu0 0.0
    %153 = vmatpush1.msra.mxu0 0.0
    %154 = vmatprep.subr.mxu0 0.0
    %155 = vmatpush1.msra.mxu0 0.0
    %156 = vmatprep.subr.mxu0 0.0
    %157 = vmatpush1.msra.mxu0 0.0
    %158 = vmatprep.subr.mxu0 0.0
    %159 = vmatpush1.msra.mxu0 0.0
    %160 = vmatprep.subr.mxu0 0.0
    %161 = vmatpush1.msra.mxu0 0.0
    %162 = vmatprep.subr.mxu0 0.0
    %163 = vmatpush1.msra.mxu0 0.0
    %164 = vmatprep.subr.mxu0 0.0
    %165 = vmatpush1.msra.mxu0 0.0
    %166 = vmatprep.subr.mxu0 0.0
    %167 = vmatpush1.msra.mxu0 0.0
    %168 = vmatprep.subr.mxu0 0.0
    %169 = vmatpush1.msra.mxu0 0.0
    %170 = vmatprep.subr.mxu0 0.0
    %171 = vmatpush1.msra.mxu0 0.0
    %172 = vmatprep.subr.mxu0 0.0
    %173 = vmatpush1.msra.mxu0 0.0
    %174 = vmatprep.subr.mxu0 0.0
    %175 = vmatpush1.msra.mxu0 0.0
    %176 = vmatprep.subr.mxu0 0.0
    %177 = vmatpush1.msra.mxu0 0.0
    %178 = vmatprep.subr.mxu0 0.0
    %179 = vmatpush1.msra.mxu0 0.0
    %180 = vmatprep.subr.mxu0 0.0
    %181 = vmatpush1.msra.mxu0 0.0
    %182 = vmatprep.subr.mxu0 0.0
    %183 = vmatpush1.msra.mxu0 0.0
    %184 = vmatprep.subr.mxu0 0.0
    %185 = vmatpush1.msra.mxu0 0.0
    %186 = vmatprep.subr.mxu0 0.0
    %187 = vmatpush1.msra.mxu0 0.0
    %188 = vmatprep.subr.mxu0 0.0
    %189 = vmatpush1.msra.mxu0 0.0
    %190 = vmatprep.subr.mxu0 0.0
    %191 = vmatpush1.msra.mxu0 0.0
    %192 = vmatprep.mubr.f32.mxu0 0.0
    %193 = vmatmul.mubr.f32.gmra.mrb[0].mxu0 %v122
    %v194 = vpop.f32.mrb[0].mxu0
    %v195 = vadd.f32 %v118, %v194
    %v196 = vpop.f32.mrb[0].mxu0
    %197 = vdwg.mxu0
    %vm198 = vcmask 39936
    %199 = vst.msk [vmem:[#allocation2] sm:$0xff] %vm198, %v195
    // Predicated region
    $region22: #{simple_network.1} parent=1 // pred_check
      _
    $region23: #{simple_network.1} parent=1 // pred_check_branch
      %201 = sbr.rel (0) target = $region25
    $region24: #{simple_network.1} parent=1 // pred_region
      %s203 = ssub.s32 128, 128
      %204 = vsyncadd [#allocation3], %s203
      %s206 = sshll.u32 [#allocation2], 4
      %s207 = int_to_ptr.vmem [resolvable:$true] %s206
      %209 = dma.vmem_to_hbm [thread:$0]  %s207, 128, %s5, [#allocation3]
    $region25: #{simple_network.1} parent=1 // pred_fallthru
      _
    // Predicated region
    $region26: #{simple_network.1} parent=1 // pred_check
      _
    $region27: #{simple_network.1} parent=1 // pred_check_branch
      %211 = sbr.rel (0) target = $region29
    $region28: #{simple_network.1} parent=1 // pred_region
      %212 = dma.done [#allocation3], 128
    $region29: #{simple_network.1} parent=1 // pred_fallthru
      _
    %213 = vsyncpa [#allocation3], 1

</llo_original>
